<compile_context>
chip_gen: v7x
topology: tpu7x:2x2x1
jax: 0.10.0
libtpu: 0.0.40
codegen_flags: <defaults>
</compile_context>

<pallas_src>
import jax
import jax.numpy as jnp
from jax.experimental import pallas as pl
from jax.experimental.pallas import tpu as pltpu

ATTENTION_SIZE = 4
HIDDEN_SIZE = 3


def _additive_attention_kernel(q_ref, kt_ref, wq_ref, wk_ref, ws_ref, bsum_ref,
                               ctx_ref, w_ref):
    # Per-grid-step refs:
    #   q_ref   : (Bb, D)      VMEM     kt_ref  : (Bb, D, T)  VMEM (T on lanes)
    #   wq_ref  : (A, D)       VMEM     wk_ref  : (A, D, 1)   VMEM (D on sublanes)
    #   ws_ref  : (A,)         SMEM     bsum_ref: (A,)        SMEM (bq + bk + bias)
    #   ctx_ref : (Bb, D)      VMEM     w_ref   : (Bb, T)     VMEM (lane-dense)
    Bb, D, T = kt_ref.shape
    A = wq_ref.shape[0]

    q = q_ref[...]                                                    # (Bb, D)
    keys_t = kt_ref[...]                                              # (Bb, D, T)

    # scores[b,t] = sum_a ws[a] * tanh( sum_d keys[b,t,d]*Wk[a,d]
    #                                 + sum_d q[b,d]*Wq[a,d] + (bq+bk+bias)[a] )
    # A is tiny (4): static unroll.  Each term is a VPU multiply + reduce with T
    # staying on the lane axis throughout (no MXU push/pop, no relayouts).
    scores = jnp.zeros((Bb, T), jnp.float32)
    for a in range(A):
        kp_a = jnp.sum(keys_t * wk_ref[a:a + 1, :, :], axis=1)        # (Bb, T)
        qp_a = jnp.sum(q * wq_ref[a:a + 1, :], axis=-1, keepdims=True)  # (Bb, 1)
        e_a = jnp.tanh(kp_a + qp_a + bsum_ref[a])                     # (Bb, T)
        scores = scores + ws_ref[a] * e_a                             # SMEM scalar * vec

    # softmax over time (lane axis); score_proj bias bs cancels here -> omitted.
    m = jnp.max(scores, axis=-1, keepdims=True)                       # (Bb, 1)
    ex = jnp.exp(scores - m)                                          # (Bb, T)
    denom = jnp.sum(ex, axis=-1, keepdims=True)                       # (Bb, 1)
    w = ex * pl.reciprocal(denom, approx=True)                        # (Bb, T)

    # context[b,d] = sum_t w[b,t] * keys[b,t,d]   (lane reduce over T)
    ctx = jnp.sum(w[:, None, :] * keys_t, axis=-1)                    # (Bb, D)

    w_ref[...] = w.astype(w_ref.dtype)
    ctx_ref[...] = ctx.astype(ctx_ref.dtype)


def prepare_params(params):
    """One-time parameter prep (hoisted out of the per-call wrapper)."""
    wq, bq, wk, bk, ws, bs, bias = params   # bs unused: cancels exactly in softmax
    D, A = jnp.asarray(wq).shape
    wq_t = jnp.asarray(wq).T.reshape(A, D)        # row a along lanes (for (B,D) query)
    wk_t = jnp.asarray(wk).T.reshape(A, D, 1)     # row a along sublanes (for (B,D,T) keys)
    ws_vec = jnp.asarray(ws).reshape(A)           # SMEM scalars
    bsum = (jnp.asarray(bq).reshape(A) + jnp.asarray(bk).reshape(A)
            + jnp.asarray(bias).reshape(A))       # folded inner biases, SMEM scalars
    return wq_t, wk_t, ws_vec, bsum


def _pick_block_b(B, T, D):
    """Batch-block size from a VMEM/roofline budget.

    Target ~1 MiB of (padded) keys per grid step; keep bb a multiple of 8 that
    divides B (sublane-dense blocks), and prefer >= 2 grid steps when B allows
    so dimension_semantics=('parallel',) can use both TensorCores on v7x.
    """
    pad = lambda n, m: ((n + m - 1) // m) * m
    row_bytes = pad(D, 8) * pad(T, 128) * 4
    bb = max(1, (1 << 20) // row_bytes)       # ~1 MiB keys tile per step
    bb = min(bb, B)
    if B >= 16:
        bb = min(bb, B // 2)                  # keep grid >= 2 for v7x megacore
    bb = (bb // 8) * 8
    while bb >= 8 and B % bb:
        bb -= 8
    if bb < 8 or B % bb:
        bb = B                                # small / indivisible batch: one block
    return bb


def additive_attention(query, keys, prepared, *, block_b=None):
    """query: (B, 1, 2H), keys: (B, T, 2H), prepared = prepare_params(params).

    Returns (context (1, B, 2H), weights (B, 1, T)) -- same layout as the torch module.
    """
    B, T, D = keys.shape
    wq_t, wk_t, ws_vec, bsum = prepared
    A = wq_t.shape[0]

    q2 = query.reshape(B, D)                          # (B, D)
    keys_t = jnp.transpose(keys, (0, 2, 1))           # (B, D, T): T on the lane axis

    bb = _pick_block_b(B, T, D) if block_b is None else block_b
    grid = (B // bb,)

    # Explicit VMEM budget: double-buffered inputs + outputs + params + headroom,
    # clamped to a range safe on v5e/v6e (128 MiB physical) and v7x (64 MiB).
    pad = lambda n, m: ((n + m - 1) // m) * m
    keys_tile = bb * pad(D, 8) * pad(T, 128) * 4
    small_tiles = bb * 4 * (3 * pad(D, 128) + pad(T, 128))      # q, ctx, w
    needed = 2 * (keys_tile + small_tiles) + A * pad(D, 8) * 128 * 4 + (1 << 20)
    vmem_limit = int(min(max(2 * needed, 32 << 20), 48 << 20))

    smem_spec = pl.BlockSpec(memory_space=pltpu.MemorySpace.SMEM)

    ctx_out, w_out = pl.pallas_call(
        _additive_attention_kernel,
        out_shape=(
            jax.ShapeDtypeStruct((B, D), jnp.float32),   # context -> (1, B, D) below
            jax.ShapeDtypeStruct((B, T), jnp.float32),   # weights -> (B, 1, T) below
        ),
        grid_spec=pltpu.PrefetchScalarGridSpec(
            num_scalar_prefetch=0,
            grid=grid,
            in_specs=[
                pl.BlockSpec((bb, D), lambda b: (b, 0)),         # query (B, D)
                pl.BlockSpec((bb, D, T), lambda b: (b, 0, 0)),   # keys  (B, D, T)
                pl.BlockSpec((A, D), lambda b: (0, 0)),          # Wq (out, in)
                pl.BlockSpec((A, D, 1), lambda b: (0, 0, 0)),    # Wk (out, in, 1)
                smem_spec,                                       # ws       (A,) scalars
                smem_spec,                                       # bq+bk+bias (A,) scalars
            ],
            out_specs=[
                pl.BlockSpec((bb, D), lambda b: (b, 0)),         # context (dense)
                pl.BlockSpec((bb, T), lambda b: (b, 0)),         # weights (lane-dense)
            ],
        ),
        compiler_params=pltpu.CompilerParams(
            dimension_semantics=("parallel",),
            vmem_limit_bytes=vmem_limit),
    )(q2, keys_t, wq_t, wk_t, ws_vec, bsum)

    # Free metadata reshapes back to the torch module's output layouts.
    return ctx_out.reshape(1, B, D), w_out.reshape(B, 1, T)


def _reference(query, keys, params):
    wq, bq, wk, bk, ws, bs, bias = params
    e = jnp.tanh(keys @ wk + bk + query @ wq + bq + bias)
    scores = e @ ws + bs                                     # (B, T, 1)
    weights = jax.nn.softmax(scores, axis=1)
    weights = jnp.transpose(weights, (0, 2, 1))              # (B, 1, T)
    context = jnp.einsum('bqt,btd->bqd', weights, keys)
    context = jnp.transpose(context, (1, 0, 2))              # (1, B, 2H)
    return context, weights


if __name__ == "__main__":
    B, T = 2, 8
    D = 2 * HIDDEN_SIZE   # 6
    A = ATTENTION_SIZE    # 4

    key = jax.random.PRNGKey(0)
    k_q, k_k, k_wq, k_bq, k_wk, k_bk, k_ws, k_bs, k_bias = jax.random.split(key, 9)

    # Deterministic parameter init (matching nn.Linear's U(-1/sqrt(in), 1/sqrt(in)) ranges).
    lim_d = 1.0 / jnp.sqrt(jnp.float32(D))
    lim_a = 1.0 / jnp.sqrt(jnp.float32(A))
    wq = jax.random.uniform(k_wq, (D, A), jnp.float32, -lim_d, lim_d)
    bq = jax.random.uniform(k_bq, (1, A), jnp.float32, -lim_d, lim_d)
    wk = jax.random.uniform(k_wk, (D, A), jnp.float32, -lim_d, lim_d)
    bk = jax.random.uniform(k_bk, (1, A), jnp.float32, -lim_d, lim_d)
    ws = jax.random.uniform(k_ws, (A, 1), jnp.float32, -lim_a, lim_a)
    bs = jax.random.uniform(k_bs, (1, 1), jnp.float32, -lim_a, lim_a)
    bias = jax.random.uniform(k_bias, (A,), jnp.float32, -0.1, 0.1)
    params = (wq, bq, wk, bk, ws, bs, bias)

    query = jax.random.normal(k_q, (B, 1, D), jnp.float32)
    keys = jax.random.normal(k_k, (B, T, D), jnp.float32)

    prepared = prepare_params(params)              # one-time prep (transposes, folded bias)
    run = jax.jit(additive_attention)
    context, weights = run(query, keys, prepared)
    jax.block_until_ready((context, weights))

    ref_ctx, ref_w = _reference(query, keys, params)
    assert context.shape == (1, B, D) and weights.shape == (B, 1, T)
    # approx reciprocal in the softmax -> compare at 1e-3.
    assert jnp.allclose(context, ref_ctx, atol=1e-3, rtol=1e-3)
    assert jnp.allclose(weights, ref_w, atol=1e-3, rtol=1e-3)

    print("KERNEL_OK")
</pallas_src>

<mosaic_0001>
module attributes {stable_mosaic.version = 11 : i64} {
  func.func @_additive_attention_kernel(%arg0: i32, %arg1: memref<2x6xf32, #tpu.memory_space<vmem>>, %arg2: memref<2x6x8xf32, #tpu.memory_space<vmem>>, %arg3: memref<4x6xf32, #tpu.memory_space<vmem>>, %arg4: memref<4x6x1xf32, #tpu.memory_space<vmem>>, %arg5: memref<4xf32, #tpu.memory_space<smem>>, %arg6: memref<4xf32, #tpu.memory_space<smem>>, %arg7: memref<2x6xf32, #tpu.memory_space<vmem>>, %arg8: memref<2x8xf32, #tpu.memory_space<vmem>>) attributes {dimension_semantics = [#tpu.dimension_semantics<parallel>], iteration_bounds = array<i64: 1>, scalar_prefetch = 0 : i64, scratch_operands = 0 : i64, tpu.core_type = #tpu.core_type<tc>, window_params = [{transform_indices = @transform_0, window_bounds = array<i64: 2, 6>}, {transform_indices = @transform_1, window_bounds = array<i64: 2, 6, 8>}, {pipeline_mode = #tpu.pipeline_mode<synchronous>, transform_indices = @transform_2, window_bounds = array<i64: 4, 6>}, {pipeline_mode = #tpu.pipeline_mode<synchronous>, transform_indices = @transform_3, window_bounds = array<i64: 4, 6, 1>}, {transform_indices = @transform_4, window_bounds = array<i64: 4>}, {transform_indices = @transform_5, window_bounds = array<i64: 4>}, {transform_indices = @transform_6, window_bounds = array<i64: 2, 6>}, {transform_indices = @transform_7, window_bounds = array<i64: 2, 8>}]} {
    %c0 = arith.constant 0 : index
    %c0_0 = arith.constant 0 : index
    %0 = vector.load %arg1[%c0, %c0_0] : memref<2x6xf32, #tpu.memory_space<vmem>>, vector<2x6xf32>
    %c0_1 = arith.constant 0 : index
    %c0_2 = arith.constant 0 : index
    %c0_3 = arith.constant 0 : index
    %1 = vector.load %arg2[%c0_1, %c0_2, %c0_3] : memref<2x6x8xf32, #tpu.memory_space<vmem>>, vector<2x6x8xf32>
    %cst = arith.constant 0.000000e+00 : f32
    %2 = vector.broadcast %cst : f32 to vector<2x8xf32>
    %c0_4 = arith.constant 0 : index
    %c0_5 = arith.constant 0 : index
    %c0_6 = arith.constant 0 : index
    %3 = vector.load %arg4[%c0_4, %c0_5, %c0_6] : memref<4x6x1xf32, #tpu.memory_space<vmem>>, vector<1x6x1xf32>
    %4 = vector.broadcast %3 : vector<1x6x1xf32> to vector<2x6x8xf32>
    %5 = arith.mulf %1, %4 : vector<2x6x8xf32>
    %cst_7 = arith.constant dense<0.000000e+00> : vector<2x8xf32>
    %6 = vector.multi_reduction <add>, %5, %cst_7 [1] : vector<2x6x8xf32> to vector<2x8xf32>
    %c0_8 = arith.constant 0 : index
    %c0_9 = arith.constant 0 : index
    %7 = vector.load %arg3[%c0_8, %c0_9] : memref<4x6xf32, #tpu.memory_space<vmem>>, vector<1x6xf32>
    %8 = vector.broadcast %7 : vector<1x6xf32> to vector<2x6xf32>
    %9 = arith.mulf %0, %8 : vector<2x6xf32>
    %cst_10 = arith.constant dense<0.000000e+00> : vector<2xf32>
    %10 = vector.multi_reduction <add>, %9, %cst_10 [1] : vector<2x6xf32> to vector<2xf32>
    %11 = vector.shape_cast %10 : vector<2xf32> to vector<2x1xf32>
    %12 = vector.broadcast %11 : vector<2x1xf32> to vector<2x8xf32>
    %13 = arith.addf %6, %12 : vector<2x8xf32>
    %c0_11 = arith.constant 0 : index
    %14 = memref.load %arg6[%c0_11] : memref<4xf32, #tpu.memory_space<smem>>
    %15 = vector.broadcast %14 : f32 to vector<2x8xf32>
    %16 = arith.addf %13, %15 : vector<2x8xf32>
    %17 = math.tanh %16 : vector<2x8xf32>
    %c0_12 = arith.constant 0 : index
    %18 = memref.load %arg5[%c0_12] : memref<4xf32, #tpu.memory_space<smem>>
    %19 = vector.broadcast %18 : f32 to vector<2x8xf32>
    %20 = arith.mulf %19, %17 : vector<2x8xf32>
    %21 = arith.addf %2, %20 : vector<2x8xf32>
    %c1 = arith.constant 1 : index
    %c0_13 = arith.constant 0 : index
    %c0_14 = arith.constant 0 : index
    %22 = vector.load %arg4[%c1, %c0_13, %c0_14] : memref<4x6x1xf32, #tpu.memory_space<vmem>>, vector<1x6x1xf32>
    %23 = vector.broadcast %22 : vector<1x6x1xf32> to vector<2x6x8xf32>
    %24 = arith.mulf %1, %23 : vector<2x6x8xf32>
    %cst_15 = arith.constant dense<0.000000e+00> : vector<2x8xf32>
    %25 = vector.multi_reduction <add>, %24, %cst_15 [1] : vector<2x6x8xf32> to vector<2x8xf32>
    %c1_16 = arith.constant 1 : index
    %c0_17 = arith.constant 0 : index
    %26 = vector.load %arg3[%c1_16, %c0_17] : memref<4x6xf32, #tpu.memory_space<vmem>>, vector<1x6xf32>
    %27 = vector.broadcast %26 : vector<1x6xf32> to vector<2x6xf32>
    %28 = arith.mulf %0, %27 : vector<2x6xf32>
    %cst_18 = arith.constant dense<0.000000e+00> : vector<2xf32>
    %29 = vector.multi_reduction <add>, %28, %cst_18 [1] : vector<2x6xf32> to vector<2xf32>
    %30 = vector.shape_cast %29 : vector<2xf32> to vector<2x1xf32>
    %31 = vector.broadcast %30 : vector<2x1xf32> to vector<2x8xf32>
    %32 = arith.addf %25, %31 : vector<2x8xf32>
    %c1_19 = arith.constant 1 : index
    %33 = memref.load %arg6[%c1_19] : memref<4xf32, #tpu.memory_space<smem>>
    %34 = vector.broadcast %33 : f32 to vector<2x8xf32>
    %35 = arith.addf %32, %34 : vector<2x8xf32>
    %36 = math.tanh %35 : vector<2x8xf32>
    %c1_20 = arith.constant 1 : index
    %37 = memref.load %arg5[%c1_20] : memref<4xf32, #tpu.memory_space<smem>>
    %38 = vector.broadcast %37 : f32 to vector<2x8xf32>
    %39 = arith.mulf %38, %36 : vector<2x8xf32>
    %40 = arith.addf %21, %39 : vector<2x8xf32>
    %c2 = arith.constant 2 : index
    %c0_21 = arith.constant 0 : index
    %c0_22 = arith.constant 0 : index
    %41 = vector.load %arg4[%c2, %c0_21, %c0_22] : memref<4x6x1xf32, #tpu.memory_space<vmem>>, vector<1x6x1xf32>
    %42 = vector.broadcast %41 : vector<1x6x1xf32> to vector<2x6x8xf32>
    %43 = arith.mulf %1, %42 : vector<2x6x8xf32>
    %cst_23 = arith.constant dense<0.000000e+00> : vector<2x8xf32>
    %44 = vector.multi_reduction <add>, %43, %cst_23 [1] : vector<2x6x8xf32> to vector<2x8xf32>
    %c2_24 = arith.constant 2 : index
    %c0_25 = arith.constant 0 : index
    %45 = vector.load %arg3[%c2_24, %c0_25] : memref<4x6xf32, #tpu.memory_space<vmem>>, vector<1x6xf32>
    %46 = vector.broadcast %45 : vector<1x6xf32> to vector<2x6xf32>
    %47 = arith.mulf %0, %46 : vector<2x6xf32>
    %cst_26 = arith.constant dense<0.000000e+00> : vector<2xf32>
    %48 = vector.multi_reduction <add>, %47, %cst_26 [1] : vector<2x6xf32> to vector<2xf32>
    %49 = vector.shape_cast %48 : vector<2xf32> to vector<2x1xf32>
    %50 = vector.broadcast %49 : vector<2x1xf32> to vector<2x8xf32>
    %51 = arith.addf %44, %50 : vector<2x8xf32>
    %c2_27 = arith.constant 2 : index
    %52 = memref.load %arg6[%c2_27] : memref<4xf32, #tpu.memory_space<smem>>
    %53 = vector.broadcast %52 : f32 to vector<2x8xf32>
    %54 = arith.addf %51, %53 : vector<2x8xf32>
    %55 = math.tanh %54 : vector<2x8xf32>
    %c2_28 = arith.constant 2 : index
    %56 = memref.load %arg5[%c2_28] : memref<4xf32, #tpu.memory_space<smem>>
    %57 = vector.broadcast %56 : f32 to vector<2x8xf32>
    %58 = arith.mulf %57, %55 : vector<2x8xf32>
    %59 = arith.addf %40, %58 : vector<2x8xf32>
    %c3 = arith.constant 3 : index
    %c0_29 = arith.constant 0 : index
    %c0_30 = arith.constant 0 : index
    %60 = vector.load %arg4[%c3, %c0_29, %c0_30] : memref<4x6x1xf32, #tpu.memory_space<vmem>>, vector<1x6x1xf32>
    %61 = vector.broadcast %60 : vector<1x6x1xf32> to vector<2x6x8xf32>
    %62 = arith.mulf %1, %61 : vector<2x6x8xf32>
    %cst_31 = arith.constant dense<0.000000e+00> : vector<2x8xf32>
    %63 = vector.multi_reduction <add>, %62, %cst_31 [1] : vector<2x6x8xf32> to vector<2x8xf32>
    %c3_32 = arith.constant 3 : index
    %c0_33 = arith.constant 0 : index
    %64 = vector.load %arg3[%c3_32, %c0_33] : memref<4x6xf32, #tpu.memory_space<vmem>>, vector<1x6xf32>
    %65 = vector.broadcast %64 : vector<1x6xf32> to vector<2x6xf32>
    %66 = arith.mulf %0, %65 : vector<2x6xf32>
    %cst_34 = arith.constant dense<0.000000e+00> : vector<2xf32>
    %67 = vector.multi_reduction <add>, %66, %cst_34 [1] : vector<2x6xf32> to vector<2xf32>
    %68 = vector.shape_cast %67 : vector<2xf32> to vector<2x1xf32>
    %69 = vector.broadcast %68 : vector<2x1xf32> to vector<2x8xf32>
    %70 = arith.addf %63, %69 : vector<2x8xf32>
    %c3_35 = arith.constant 3 : index
    %71 = memref.load %arg6[%c3_35] : memref<4xf32, #tpu.memory_space<smem>>
    %72 = vector.broadcast %71 : f32 to vector<2x8xf32>
    %73 = arith.addf %70, %72 : vector<2x8xf32>
    %74 = math.tanh %73 : vector<2x8xf32>
    %c3_36 = arith.constant 3 : index
    %75 = memref.load %arg5[%c3_36] : memref<4xf32, #tpu.memory_space<smem>>
    %76 = vector.broadcast %75 : f32 to vector<2x8xf32>
    %77 = arith.mulf %76, %74 : vector<2x8xf32>
    %78 = arith.addf %59, %77 : vector<2x8xf32>
    %cst_37 = arith.constant dense<0xFF800000> : vector<2xf32>
    %79 = vector.multi_reduction <maximumf>, %78, %cst_37 [1] : vector<2x8xf32> to vector<2xf32>
    %80 = vector.shape_cast %79 : vector<2xf32> to vector<2x1xf32>
    %81 = vector.broadcast %80 : vector<2x1xf32> to vector<2x8xf32>
    %82 = arith.subf %78, %81 : vector<2x8xf32>
    %83 = math.exp %82 : vector<2x8xf32>
    %cst_38 = arith.constant dense<0.000000e+00> : vector<2xf32>
    %84 = vector.multi_reduction <add>, %83, %cst_38 [1] : vector<2x8xf32> to vector<2xf32>
    %85 = vector.shape_cast %84 : vector<2xf32> to vector<2x1xf32>
    %86 = tpu.reciprocal %85 {approx = true} : vector<2x1xf32> -> vector<2x1xf32>
    %87 = vector.broadcast %86 : vector<2x1xf32> to vector<2x8xf32>
    %88 = arith.mulf %83, %87 : vector<2x8xf32>
    %89 = vector.shape_cast %88 : vector<2x8xf32> to vector<2x1x8xf32>
    %90 = vector.broadcast %89 : vector<2x1x8xf32> to vector<2x6x8xf32>
    %91 = arith.mulf %90, %1 : vector<2x6x8xf32>
    %cst_39 = arith.constant dense<0.000000e+00> : vector<2x6xf32>
    %92 = vector.multi_reduction <add>, %91, %cst_39 [2] : vector<2x6x8xf32> to vector<2x6xf32>
    %c0_40 = arith.constant 0 : index
    %c0_41 = arith.constant 0 : index
    %93 = vector.load %arg8[%c0_40, %c0_41] : memref<2x8xf32, #tpu.memory_space<vmem>>, vector<2x8xf32>
    tpu.vector_store %arg8[%c0_40, %c0_41], %88 {strides = array<i32>} : memref<2x8xf32, #tpu.memory_space<vmem>>, vector<2x8xf32>,
    %c0_42 = arith.constant 0 : index
    %c0_43 = arith.constant 0 : index
    %94 = vector.load %arg7[%c0_42, %c0_43] : memref<2x6xf32, #tpu.memory_space<vmem>>, vector<2x6xf32>
    tpu.vector_store %arg7[%c0_42, %c0_43], %92 {strides = array<i32>} : memref<2x6xf32, #tpu.memory_space<vmem>>, vector<2x6xf32>,
    return
  }
  func.func @transform_0(%arg0: i32) -> (i32, i32) {
    %c0_i32 = arith.constant 0 : i32
    %c0_i32_0 = arith.constant 0 : i32
    return %arg0, %c0_i32 : i32, i32
  }
  func.func @transform_1(%arg0: i32) -> (i32, i32, i32) {
    %c0_i32 = arith.constant 0 : i32
    %c0_i32_0 = arith.constant 0 : i32
    %c0_i32_1 = arith.constant 0 : i32
    return %arg0, %c0_i32, %c0_i32_0 : i32, i32, i32
  }
  func.func @transform_2(%arg0: i32) -> (i32, i32) {
    %c0_i32 = arith.constant 0 : i32
    %c0_i32_0 = arith.constant 0 : i32
    %c0_i32_1 = arith.constant 0 : i32
    return %c0_i32, %c0_i32_0 : i32, i32
  }
  func.func @transform_3(%arg0: i32) -> (i32, i32, i32) {
    %c0_i32 = arith.constant 0 : i32
    %c0_i32_0 = arith.constant 0 : i32
    %c0_i32_1 = arith.constant 0 : i32
    %c0_i32_2 = arith.constant 0 : i32
    return %c0_i32, %c0_i32_0, %c0_i32_1 : i32, i32, i32
  }
  func.func @transform_4(%arg0: i32) -> i32 {
    %c0_i32 = arith.constant 0 : i32
    %c0_i32_0 = arith.constant 0 : i32
    return %c0_i32 : i32
  }
  func.func @transform_5(%arg0: i32) -> i32 {
    %c0_i32 = arith.constant 0 : i32
    %c0_i32_0 = arith.constant 0 : i32
    return %c0_i32 : i32
  }
  func.func @transform_6(%arg0: i32) -> (i32, i32) {
    %c0_i32 = arith.constant 0 : i32
    %c0_i32_0 = arith.constant 0 : i32
    return %arg0, %c0_i32 : i32, i32
  }
  func.func @transform_7(%arg0: i32) -> (i32, i32) {
    %c0_i32 = arith.constant 0 : i32
    %c0_i32_0 = arith.constant 0 : i32
    return %arg0, %c0_i32 : i32, i32
  }
}

</mosaic_0001>

<llo_original>
// kernel: additive_attention.1
$region0: #{additive_attention.1}
  #allocation0 [shape = 'u32[]', space=smem, size = 0x4, offset = 0x4, fixed_abs, tag = 'smem constant byte address 0x4 - core index']
  #allocation1 [shape = 'u32[144,128]{1,0:T(1,128)}', space=vmem, size = 0x12000, scoped, tag = 'internal scratch']
  %s0 = inlined_call_operand.vmem [shape: f32[2,6], index: 0, kind: input, shape index: {}]
  %s1 = inlined_call_operand.vmem [shape: f32[2,6,8], index: 1, kind: input, shape index: {}]
  %s2 = inlined_call_operand.vmem [shape: f32[4,6], index: 2, kind: input, shape index: {}]
  %s3 = inlined_call_operand.vmem [shape: f32[4,6,1], index: 3, kind: input, shape index: {}]
  %s4 = inlined_call_operand.vmem [shape: f32[4], index: 4, kind: input, shape index: {}]
  %s5 = inlined_call_operand.vmem [shape: f32[4], index: 5, kind: input, shape index: {}]
  %s6 = inlined_call_operand.hbm [shape: f32[2,6], index: 6, kind: output, shape index: {0}]
  %s7 = inlined_call_operand.hbm [shape: f32[2,8], index: 7, kind: output, shape index: {1}]
  %8 = xla_tuple %s6, %s7
  %s9 = sld [smem:[#allocation0]]
  $region50: #{additive_attention.1} parent=0
    _
  %s11 = ssub.s32 1, %s9
  %s12 = scalar_select 0, %s11, %s9
  $region1: #{additive_attention.1} parent=0
    #allocation2 [shape = 'u8[512]{0}', space=smem, size = 0x200, scoped, tag = 'input window, operand 4, single buffered']
    #allocation3 [shape = 's32[1]{0}', space=sflag, size = 0x4, scoped, tag = 'scoped memory for additive_attention.1']
    #allocation4 [shape = 's32[1]{0}', space=sflag, size = 0x4, scoped, tag = 'scoped memory for additive_attention.1']
    #allocation5 [shape = 'u8[512]{0}', space=smem, size = 0x200, scoped, tag = 'input window, operand 5, single buffered']
    #allocation6 [shape = 's32[1]{0}', space=sflag, size = 0x4, scoped, tag = 'scoped memory for additive_attention.1']
    #allocation7 [shape = 'u8[1024]{0}', space=vmem, size = 0x400, scoped, tag = 'output window, operand 0, single buffered']
    #allocation8 [shape = 'u8[1024]{0}', space=vmem, size = 0x400, scoped, tag = 'output window, operand 1, single buffered']
    #allocation9 [shape = 's32[1]{0}', space=sflag, size = 0x4, scoped, tag = 'scoped memory for additive_attention.1']
    %13 = vsyncpa [#allocation4], 0
    %14 = vsyncpa [#allocation6], 0
    %15 = vsyncpa [#allocation3], 0
    %16 = vsyncpa [#allocation9], 0
    // Predicated region
    $region2: #{additive_attention.1} parent=1 // pred_check
      _
    $region3: #{additive_attention.1} parent=1 // pred_check_branch
      %18 = sbr.rel (0) target = $region5
    $region4: #{additive_attention.1} parent=1 // pred_region
      _
    $region5: #{additive_attention.1} parent=1 // pred_fallthru
      _
    // Predicated region
    $region6: #{additive_attention.1} parent=1 // pred_check
      _
    $region7: #{additive_attention.1} parent=1 // pred_check_branch
      %20 = sbr.rel (0) target = $region9
    $region8: #{additive_attention.1} parent=1 // pred_region
      _
    $region9: #{additive_attention.1} parent=1 // pred_fallthru
      _
    // Predicated region
    $region10: #{additive_attention.1} parent=1 // pred_check
      _
    $region11: #{additive_attention.1} parent=1 // pred_check_branch
      %22 = sbr.rel (0) target = $region13
    $region12: #{additive_attention.1} parent=1 // pred_region
      _
    $region13: #{additive_attention.1} parent=1 // pred_fallthru
      _
    // Predicated region
    $region14: #{additive_attention.1} parent=1 // pred_check
      _
    $region15: #{additive_attention.1} parent=1 // pred_check_branch
      %24 = sbr.rel (0) target = $region17
    $region16: #{additive_attention.1} parent=1 // pred_region
      _
    $region17: #{additive_attention.1} parent=1 // pred_fallthru
      _
    // Predicated region
    $region18: #{additive_attention.1} parent=1 // pred_check
      _
    $region19: #{additive_attention.1} parent=1 // pred_check_branch
      %26 = sbr.rel (0) target = $region21
    $region20: #{additive_attention.1} parent=1 // pred_region
      %s28 = ssub.s32 16, 16
      %29 = vsyncadd [#allocation4], %s28
      %s31 = sshll.u32 %s4, 4
      %s32 = int_to_ptr.vmem [resolvable:$true] %s31
      %34 = dma.vmem_to_smem %s32, 16, [#allocation2], [#allocation4]
    $region21: #{additive_attention.1} parent=1 // pred_fallthru
      _
    // Predicated region
    $region22: #{additive_attention.1} parent=1 // pred_check
      _
    $region23: #{additive_attention.1} parent=1 // pred_check_branch
      %36 = sbr.rel (0) target = $region25
    $region24: #{additive_attention.1} parent=1 // pred_region
      %s38 = ssub.s32 16, 16
      %39 = vsyncadd [#allocation6], %s38
      %s41 = sshll.u32 %s5, 4
      %s42 = int_to_ptr.vmem [resolvable:$true] %s41
      %44 = dma.vmem_to_smem %s42, 16, [#allocation5], [#allocation6]
    $region25: #{additive_attention.1} parent=1 // pred_fallthru
      _
    // Predicated region
    $region26: #{additive_attention.1} parent=1 // pred_check
      _
    $region27: #{additive_attention.1} parent=1 // pred_check_branch
      %46 = sbr.rel (0) target = $region29
    $region28: #{additive_attention.1} parent=1 // pred_region
      %47 = dma.done [#allocation4], 16
    $region29: #{additive_attention.1} parent=1 // pred_fallthru
      _
    // Predicated region
    $region30: #{additive_attention.1} parent=1 // pred_check
      _
    $region31: #{additive_attention.1} parent=1 // pred_check_branch
      %49 = sbr.rel (0) target = $region33
    $region32: #{additive_attention.1} parent=1 // pred_region
      %50 = dma.done [#allocation6], 16
    $region33: #{additive_attention.1} parent=1 // pred_fallthru
      _
    %51 = sfence
    %v52 = vld [vmem:[%s0] sm:$0x3]
    %v53 = vld [vmem:[%s1] sm:$0x3f]
    %v54 = vld [vmem:[%s1 + $0x8] sm:$0x3f]
    %v55 = vld [vmem:[%s3] sm:$0x3f]
    %57 = vset.pattern.permute.xlu0 0
    %58 = vperm.xlu0 %57, %v55
    %v59 = vpop.permute.xlu0 %58
    %v61 = vmul.f32 %v53, %v59
    %v62 = vmul.f32 %v54, %v59
    %vm63 = vcmask 62464
    %v64 = vsel %vm63, %v61, 0.0
    %v65 = vrot.slane %v64, 4
    %v66 = vadd.f32 %v64, %v65
    %v67 = vrot.slane %v66, 2
    %v68 = vadd.f32 %v66, %v67
    %v69 = vrot.slane %v68, 1
    %v70 = vadd.f32 %v68, %v69
    %v71 = vsel %vm63, %v62, 0.0
    %v72 = vrot.slane %v71, 4
    %v73 = vadd.f32 %v71, %v72
    %v74 = vrot.slane %v73, 2
    %v75 = vadd.f32 %v73, %v74
    %v76 = vrot.slane %v75, 1
    %v77 = vadd.f32 %v75, %v76
    %v78 = vld [vmem:[%s2] sm:$0x1]
    %v79 = vlaneseq
    %v80 = vshrl.u32 %v79, 7
    %v81 = vsub.s32 0, %v80
    %v82 = vrot.slane %v78, %v81
    %v83 = vmul.f32 %v52, %v82
    %vm84 = vcmask 41984
    %v85 = vsel %vm84, %v83, 0.0
    %86 = vadd.xlane.f32.xlu0 %v85
    %v87 = vpop.xlane.xlu0 %86
    %v89 = vrot.slane %v87, 1
    %v92 = vadd.f32 %v70, %v87
    %v93 = vadd.f32 %v77, %v89
    %s94 = sld [smem:[#allocation5]]
    %v95 = vstv %s94
    %v96 = vadd.f32 %v92, %v95
    %v97 = vadd.f32 %v93, %v95
    %v98 = vtanh.pop %v96
    %v99 = vtanh.pop %v97
    %s100 = sld [smem:[#allocation2]]
    %v101 = vstv %s100
    %v102 = vmul.f32 %v101, %v98
    %v103 = vmul.f32 %v101, %v99
    %v104 = vadd.f32 %v102, 0.0
    %v105 = vadd.f32 %v103, 0.0
    %s106 = scalar_lea.vmem %s3, 8
    %v107 = vld [vmem:[%s106] sm:$0x3f]
    %109 = vset.pattern.permute.xlu0 0
    %110 = vperm.xlu0 %109, %v107
    %v111 = vpop.permute.xlu0 %110
    %v113 = vmul.f32 %v53, %v111
    %v114 = vmul.f32 %v54, %v111
    %v115 = vsel %vm63, %v113, 0.0
    %v116 = vrot.slane %v115, 4
    %v117 = vadd.f32 %v115, %v116
    %v118 = vrot.slane %v117, 2
    %v119 = vadd.f32 %v117, %v118
    %v120 = vrot.slane %v119, 1
    %v121 = vadd.f32 %v119, %v120
    %v122 = vsel %vm63, %v114, 0.0
    %v123 = vrot.slane %v122, 4
    %v124 = vadd.f32 %v122, %v123
    %v125 = vrot.slane %v124, 2
    %v126 = vadd.f32 %v124, %v125
    %v127 = vrot.slane %v126, 1
    %v128 = vadd.f32 %v126, %v127
    %v129 = vld [vmem:[%s2 + $0x1] sm:$0x1]
    %v130 = vlaneseq
    %v131 = vshrl.u32 %v130, 7
    %v132 = vsub.s32 0, %v131
    %v133 = vrot.slane %v129, %v132
    %v134 = vmul.f32 %v52, %v133
    %v135 = vsel %vm84, %v134, 0.0
    %136 = vadd.xlane.f32.xlu0 %v135
    %v137 = vpop.xlane.xlu0 %136
    %v139 = vrot.slane %v137, 1
    %v142 = vadd.f32 %v121, %v137
    %v143 = vadd.f32 %v128, %v139
    %s144 = sld [smem:[#allocation5 + $0x1]]
    %v145 = vstv %s144
    %v146 = vadd.f32 %v142, %v145
    %v147 = vadd.f32 %v143, %v145
    %v148 = vtanh.pop %v146
    %v149 = vtanh.pop %v147
    %s150 = sld [smem:[#allocation2 + $0x1]]
    %v151 = vstv %s150
    %v152 = vmul.f32 %v151, %v148
    %v153 = vmul.f32 %v151, %v149
    %v154 = vadd.f32 %v104, %v152
    %v155 = vadd.f32 %v105, %v153
    %s156 = scalar_lea.vmem %s3, 16
    %v157 = vld [vmem:[%s156] sm:$0x3f]
    %159 = vset.pattern.permute.xlu0 0
    %160 = vperm.xlu0 %159, %v157
    %v161 = vpop.permute.xlu0 %160
    %v163 = vmul.f32 %v53, %v161
    %v164 = vmul.f32 %v54, %v161
    %v165 = vsel %vm63, %v163, 0.0
    %v166 = vrot.slane %v165, 4
    %v167 = vadd.f32 %v165, %v166
    %v168 = vrot.slane %v167, 2
    %v169 = vadd.f32 %v167, %v168
    %v170 = vrot.slane %v169, 1
    %v171 = vadd.f32 %v169, %v170
    %v172 = vsel %vm63, %v164, 0.0
    %v173 = vrot.slane %v172, 4
    %v174 = vadd.f32 %v172, %v173
    %v175 = vrot.slane %v174, 2
    %v176 = vadd.f32 %v174, %v175
    %v177 = vrot.slane %v176, 1
    %v178 = vadd.f32 %v176, %v177
    %v179 = vld [vmem:[%s2 + $0x2] sm:$0x1]
    %v180 = vlaneseq
    %v181 = vshrl.u32 %v180, 7
    %v182 = vsub.s32 0, %v181
    %v183 = vrot.slane %v179, %v182
    %v184 = vmul.f32 %v52, %v183
    %v185 = vsel %vm84, %v184, 0.0
    %186 = vadd.xlane.f32.xlu0 %v185
    %v187 = vpop.xlane.xlu0 %186
    %v189 = vrot.slane %v187, 1
    %v192 = vadd.f32 %v171, %v187
    %v193 = vadd.f32 %v178, %v189
    %s194 = sld [smem:[#allocation5 + $0x2]]
    %v195 = vstv %s194
    %v196 = vadd.f32 %v192, %v195
    %v197 = vadd.f32 %v193, %v195
    %v198 = vtanh.pop %v196
    %v199 = vtanh.pop %v197
    %s200 = sld [smem:[#allocation2 + $0x2]]
    %v201 = vstv %s200
    %v202 = vmul.f32 %v201, %v198
    %v203 = vmul.f32 %v201, %v199
    %v204 = vadd.f32 %v154, %v202
    %v205 = vadd.f32 %v155, %v203
    %s206 = scalar_lea.vmem %s3, 24
    %v207 = vld [vmem:[%s206] sm:$0x3f]
    %209 = vset.pattern.permute.xlu0 0
    %210 = vperm.xlu0 %209, %v207
    %v211 = vpop.permute.xlu0 %210
    %v213 = vmul.f32 %v53, %v211
    %v214 = vmul.f32 %v54, %v211
    %v215 = vsel %vm63, %v213, 0.0
    %v216 = vrot.slane %v215, 4
    %v217 = vadd.f32 %v215, %v216
    %v218 = vrot.slane %v217, 2
    %v219 = vadd.f32 %v217, %v218
    %v220 = vrot.slane %v219, 1
    %v221 = vadd.f32 %v219, %v220
    %v222 = vsel %vm63, %v214, 0.0
    %v223 = vrot.slane %v222, 4
    %v224 = vadd.f32 %v222, %v223
    %v225 = vrot.slane %v224, 2
    %v226 = vadd.f32 %v224, %v225
    %v227 = vrot.slane %v226, 1
    %v228 = vadd.f32 %v226, %v227
    %v229 = vld [vmem:[%s2 + $0x3] sm:$0x1]
    %v230 = vlaneseq
    %v231 = vshrl.u32 %v230, 7
    %v232 = vsub.s32 0, %v231
    %v233 = vrot.slane %v229, %v232
    %v234 = vmul.f32 %v52, %v233
    %v235 = vsel %vm84, %v234, 0.0
    %236 = vadd.xlane.f32.xlu0 %v235
    %v237 = vpop.xlane.xlu0 %236
    %v239 = vrot.slane %v237, 1
    %v242 = vadd.f32 %v221, %v237
    %v243 = vadd.f32 %v228, %v239
    %s244 = sld [smem:[#allocation5 + $0x3]]
    %v245 = vstv %s244
    %v246 = vadd.f32 %v242, %v245
    %v247 = vadd.f32 %v243, %v245
    %v248 = vtanh.pop %v246
    %v249 = vtanh.pop %v247
    %s250 = sld [smem:[#allocation2 + $0x3]]
    %v251 = vstv %s250
    %v252 = vmul.f32 %v251, %v248
    %v253 = vmul.f32 %v251, %v249
    %v254 = vadd.f32 %v204, %v252
    %v255 = vadd.f32 %v205, %v253
    %v258 = vrot.slane %v255, 7
    %vm259 = vcmask 1041409
    %v260 = vsel %vm259, %v258, %v254
    %vm262 = vcmask 58368
    %v263 = vsel %vm262, %v260, -inf
    %264 = vmax.xlane.f32.xlu0 %v263
    %v265 = vpop.xlane.xlu0 %264
    %v267 = vrot.slane %v265, 1
    %v270 = vsub.f32 %v254, %v265
    %v271 = vsub.f32 %v255, %v267
    %v272 = vmul.f32 %v270, 1.442695
    %v273 = vpow.pop %v272
    %v274 = vmul.f32 %v271, 1.442695
    %v275 = vpow.pop %v274
    %v278 = vrot.slane %v275, 7
    %v279 = vsel %vm259, %v278, %v273
    %v281 = vsel %vm262, %v279, 0.0
    %282 = vadd.xlane.f32.xlu0 %v281
    %v283 = vpop.xlane.xlu0 %282
    %v284 = vrcp.pop %v283
    %v286 = vrot.slane %v284, 1
    %v289 = vmul.f32 %v273, %v284
    %v290 = vmul.f32 %v275, %v286
    %v291 = vlaneseq
    %v292 = vshrl.u32 %v291, 7
    %v293 = vsub.s32 0, %v292
    %v294 = vrot.slane %v289, %v293
    %v295 = vlaneseq
    %v296 = vshrl.u32 %v295, 7
    %v297 = vsub.s32 0, %v296
    %v298 = vrot.slane %v290, %v297
    %v299 = vmul.f32 %v294, %v53
    %v300 = vmul.f32 %v298, %v54
    %v301 = vsel %vm63, %v299, 0.0
    %302 = vadd.xlane.f32.xlu0 %v301
    %v303 = vpop.xlane.xlu0 %302
    %v304 = vsel %vm63, %v300, 0.0
    %305 = vadd.xlane.f32.xlu0 %v304
    %v306 = vpop.xlane.xlu0 %305
    %v309 = vrot.slane %v290, 7
    %v310 = vsel %vm259, %v309, %v289
    %312 = vst.msk [vmem:[#allocation8] sm:$0x3] %vm262, %v310
    %v315 = vlaneseq
    %v316 = vand.u32 %v315, 127
    %v317 = vlaneseq
    %v318 = vshrl.u32 %v317, 7
    %v319 = vsub.s32 %v316, %v318
    %v320 = vrot.slane %v303, %v319
    %v321 = vlaneseq
    %v322 = vshrl.u32 %v321, 7
    %v323 = vsub.s32 %v316, %v322
    %v324 = vrot.slane %v306, %v323
    %v325 = vsel %vm259, %v324, %v320
    %327 = vst.msk [vmem:[#allocation7] sm:$0x3] %vm84, %v325
    // Predicated region
    $region34: #{additive_attention.1} parent=1 // pred_check
      _
    $region35: #{additive_attention.1} parent=1 // pred_check_branch
      %329 = sbr.rel (0) target = $region37
    $region36: #{additive_attention.1} parent=1 // pred_region
      %s331 = ssub.s32 32, 32
      %332 = vsyncadd [#allocation3], %s331
      %s334 = sshll.u32 [#allocation7], 4
      %s335 = int_to_ptr.vmem [resolvable:$true] %s334
      %337 = dma.vmem_to_hbm [thread:$0]  %s335, 32, %s6, [#allocation3]
    $region37: #{additive_attention.1} parent=1 // pred_fallthru
      _
    // Predicated region
    $region38: #{additive_attention.1} parent=1 // pred_check
      _
    $region39: #{additive_attention.1} parent=1 // pred_check_branch
      %339 = sbr.rel (0) target = $region41
    $region40: #{additive_attention.1} parent=1 // pred_region
      %s341 = ssub.s32 32, 32
      %342 = vsyncadd [#allocation9], %s341
      %s344 = sshll.u32 [#allocation8], 4
      %s345 = int_to_ptr.vmem [resolvable:$true] %s344
      %347 = dma.vmem_to_hbm [thread:$0]  %s345, 32, %s7, [#allocation9]
    $region41: #{additive_attention.1} parent=1 // pred_fallthru
      _
    // Predicated region
    $region42: #{additive_attention.1} parent=1 // pred_check
      _
    $region43: #{additive_attention.1} parent=1 // pred_check_branch
      %349 = sbr.rel (0) target = $region45
    $region44: #{additive_attention.1} parent=1 // pred_region
      %350 = dma.done [#allocation3], 32
    $region45: #{additive_attention.1} parent=1 // pred_fallthru
      _
    // Predicated region
    $region46: #{additive_attention.1} parent=1 // pred_check
      _
    $region47: #{additive_attention.1} parent=1 // pred_check_branch
      %352 = sbr.rel (0) target = $region49
    $region48: #{additive_attention.1} parent=1 // pred_region
      %353 = dma.done [#allocation9], 32
    $region49: #{additive_attention.1} parent=1 // pred_fallthru
      _
    %354 = vsyncpa [#allocation3], 1
    %355 = vsyncpa [#allocation9], 1
    %356 = vsyncpa [#allocation4], 1
    %357 = vsyncpa [#allocation6], 1

</llo_original>
